<compile_context>
chip_gen: v5e
topology: v5e:2x2
jax: 0.10.0
libtpu: 0.0.40
codegen_flags: <defaults>
</compile_context>

<pallas_src>
import jax
import jax.numpy as jnp
from jax.experimental import pallas as pl
from jax.experimental.pallas import tpu as pltpu


def _round_up(x, m):
    return ((x + m - 1) // m) * m


# ----------------------------------- kernel --------------------------------------------

def conv_bn_relu_kernel(x_ref, w_ref, b_ref, o_ref):
    # x_ref: (Cin, Lt) f32, w_ref: (Cout, Cin) f32, b_ref: (Cout, 1) f32,
    # o_ref: (Cout, Lt) f32.  One MXU matmul + bias + ReLU per tile.
    h = jnp.dot(w_ref[...], x_ref[...], preferred_element_type=jnp.float32)
    o_ref[...] = jnp.maximum(h + b_ref[...], 0.0)


# ----------------------------------- wrapper -------------------------------------------

def conv_bn_relu_1d_forward(x, w_fused, b_fused, *, l_tile=2048):
    """x: [B, C_in, L] float32 (NCW, as in PyTorch). Returns [B, C_out, L] float32.

    w_fused: [C_out, C_in] fused conv+BN weight, b_fused: [C_out] fused bias.
    """
    B, Cin, L = x.shape
    Cout = w_fused.shape[0]

    # Lane tile along L: multiple of 128, clamped to (padded) L.
    lt = min(_round_up(l_tile, 128), _round_up(L, 128))
    # Guarantee >= 2 grid steps so both TensorCores on dual-TC chips (v7x) get work.
    if B * pl.cdiv(L, lt) < 2 and lt > 128:
        lt = max(128, _round_up(lt // 2, 128))
    Lp = _round_up(L, lt)

    xp = x if Lp == L else jnp.pad(x, ((0, 0), (0, 0), (0, Lp - L)))
    wb = w_fused.astype(jnp.float32)
    bb = b_fused.reshape(Cout, 1).astype(jnp.float32)

    grid = (B, Lp // lt)

    cost = pl.CostEstimate(
        flops=2 * B * Lp * Cin * Cout,
        transcendentals=0,
        bytes_accessed=B * Cin * Lp * 4 + Cout * Cin * 4 + Cout * 4 + B * Cout * Lp * 4,
    )

    out = pl.pallas_call(
        conv_bn_relu_kernel,
        out_shape=jax.ShapeDtypeStruct((B, Cout, Lp), jnp.float32),
        grid_spec=pltpu.PrefetchScalarGridSpec(
            num_scalar_prefetch=0,
            grid=grid,
            in_specs=[
                # x: one batch row, all channels, one L tile (batch dim squeezed).
                pl.BlockSpec((pl.Squeezed(), Cin, lt), lambda b, l: (b, 0, l)),
                # fused weight / bias: grid-invariant blocks.
                pl.BlockSpec((Cout, Cin), lambda b, l: (0, 0)),
                pl.BlockSpec((Cout, 1), lambda b, l: (0, 0)),
            ],
            out_specs=pl.BlockSpec((pl.Squeezed(), Cout, lt), lambda b, l: (b, 0, l)),
        ),
        compiler_params=pltpu.CompilerParams(
            dimension_semantics=("parallel", "parallel"),
        ),
        cost_estimate=cost,
    )(xp, wb, bb)

    # Padded L columns (if any) pass through ReLU(0 + b) and are dropped here.
    return out if Lp == L else out[:, :, :L]


# ----------------------- parameter construction (deterministic) -----------------------

def _fuse_conv_bn(w, b_conv, gamma, beta, mu, var, eps=1e-5):
    # w: (cout, cin) = Conv1d weight (cout, cin, 1) squeezed. Eval-mode BN fusion.
    scale = gamma / jnp.sqrt(var + eps)                 # (cout,)
    w_f = w * scale[:, None]
    b_f = (b_conv - mu) * scale + beta
    return w_f.astype(jnp.float32), b_f.astype(jnp.float32)


def init_params(key, in_channels, out_channels):
    k = jax.random.split(key, 4)
    w = 0.1 * jax.random.normal(k[0], (out_channels, in_channels), jnp.float32)
    b = 0.1 * jax.random.normal(k[1], (out_channels,), jnp.float32)
    gamma = 1.0 + 0.1 * jax.random.normal(k[2], (out_channels,), jnp.float32)
    beta = 0.1 * jax.random.normal(k[3], (out_channels,), jnp.float32)
    mu = jnp.zeros((out_channels,), jnp.float32)    # fresh BN running stats (eval mode)
    var = jnp.ones((out_channels,), jnp.float32)
    return _fuse_conv_bn(w, b, gamma, beta, mu, var)


# ------------------------------- pure-JAX reference ------------------------------------

def ref_forward(x, w_fused, b_fused):
    # x: [B, Cin, L] f32 -> ReLU(W x + b) -> [B, Cout, L], all in f32.
    h = jnp.einsum('oc,bcl->bol', w_fused, x) + b_fused[None, :, None]
    return jnp.maximum(h, 0.0)


if __name__ == "__main__":
    # ConvBNReLU1D(in_channels=16, out_channels=32, kernel_size=1)
    B, Cin, L = 2, 16, 1024
    Cout = 32

    key = jax.random.PRNGKey(0)
    kx, kp = jax.random.split(key)
    x = jax.random.normal(kx, (B, Cin, L), jnp.float32)
    w_fused, b_fused = init_params(kp, Cin, Cout)

    out = conv_bn_relu_1d_forward(x, w_fused, b_fused)
    out = jax.block_until_ready(out)

    ref = jax.block_until_ready(ref_forward(x, w_fused, b_fused))
    assert out.shape == (B, Cout, L), out.shape
    # f32 matmuls on the MXU may be decomposed into bf16 passes under default
    # precision (both kernel and reference), so keep a modest tolerance.
    assert jnp.allclose(out, ref, atol=2e-2, rtol=2e-2), float(jnp.max(jnp.abs(out - ref)))

    print("KERNEL_OK")
</pallas_src>

<mosaic_0001>
module attributes {stable_mosaic.version = 11 : i64} {
  func.func @conv_bn_relu_kernel(%arg0: i32, %arg1: i32, %arg2: memref<1x16x1024xf32, #tpu.memory_space<vmem>>, %arg3: memref<32x16xf32, #tpu.memory_space<vmem>>, %arg4: memref<32x1xf32, #tpu.memory_space<vmem>>, %arg5: memref<1x32x1024xf32, #tpu.memory_space<vmem>>) attributes {dimension_semantics = [#tpu.dimension_semantics<parallel>, #tpu.dimension_semantics<parallel>], iteration_bounds = array<i64: 2, 1>, scalar_prefetch = 0 : i64, scratch_operands = 0 : i64, tpu.core_type = #tpu.core_type<tc>, window_params = [{transform_indices = @transform_0, window_bounds = array<i64: 1, 16, 1024>}, {pipeline_mode = #tpu.pipeline_mode<synchronous>, transform_indices = @transform_1, window_bounds = array<i64: 32, 16>}, {pipeline_mode = #tpu.pipeline_mode<synchronous>, transform_indices = @transform_2, window_bounds = array<i64: 32, 1>}, {transform_indices = @transform_3, window_bounds = array<i64: 1, 32, 1024>}]} {
    %c0 = arith.constant 0 : index
    %c0_0 = arith.constant 0 : index
    %0 = vector.load %arg3[%c0, %c0_0] : memref<32x16xf32, #tpu.memory_space<vmem>>, vector<32x16xf32>
    %c0_1 = arith.constant 0 : index
    %c0_2 = arith.constant 0 : index
    %c0_3 = arith.constant 0 : index
    %1 = vector.load %arg2[%c0_1, %c0_2, %c0_3] : memref<1x16x1024xf32, #tpu.memory_space<vmem>>, vector<1x16x1024xf32>
    %2 = vector.shape_cast %1 : vector<1x16x1024xf32> to vector<16x1024xf32>
    %cst = arith.constant dense<0.000000e+00> : vector<32x1024xf32>
    %3 = tpu.matmul %0, %2, %cst {dimension_numbers = #tpu.dot_dimension_numbers<[1], [0], [0], [1], [0, 0, 1, 1], [], []>} : vector<32x16xf32>, vector<16x1024xf32>, vector<32x1024xf32> -> vector<32x1024xf32>
    %c0_4 = arith.constant 0 : index
    %c0_5 = arith.constant 0 : index
    %4 = vector.load %arg4[%c0_4, %c0_5] : memref<32x1xf32, #tpu.memory_space<vmem>>, vector<32x1xf32>
    %5 = vector.broadcast %4 : vector<32x1xf32> to vector<32x1024xf32>
    %6 = arith.addf %3, %5 : vector<32x1024xf32>
    %cst_6 = arith.constant 0.000000e+00 : f32
    %7 = vector.broadcast %cst_6 : f32 to vector<32x1024xf32>
    %8 = arith.maximumf %6, %7 : vector<32x1024xf32>
    %c0_7 = arith.constant 0 : index
    %c0_8 = arith.constant 0 : index
    %c0_9 = arith.constant 0 : index
    %9 = vector.load %arg5[%c0_7, %c0_8, %c0_9] : memref<1x32x1024xf32, #tpu.memory_space<vmem>>, vector<1x32x1024xf32>
    %10 = vector.shape_cast %9 : vector<1x32x1024xf32> to vector<32x1024xf32>
    %11 = vector.shape_cast %8 : vector<32x1024xf32> to vector<1x32x1024xf32>
    tpu.vector_store %arg5[%c0_7, %c0_8, %c0_9], %11 {strides = array<i32>} : memref<1x32x1024xf32, #tpu.memory_space<vmem>>, vector<1x32x1024xf32>,
    return
  }
  func.func @transform_0(%arg0: i32, %arg1: i32) -> (i32, i32, i32) {
    %c0_i32 = arith.constant 0 : i32
    %c0_i32_0 = arith.constant 0 : i32
    return %arg0, %c0_i32, %arg1 : i32, i32, i32
  }
  func.func @transform_1(%arg0: i32, %arg1: i32) -> (i32, i32) {
    %c0_i32 = arith.constant 0 : i32
    %c0_i32_0 = arith.constant 0 : i32
    %c0_i32_1 = arith.constant 0 : i32
    return %c0_i32, %c0_i32_0 : i32, i32
  }
  func.func @transform_2(%arg0: i32, %arg1: i32) -> (i32, i32) {
    %c0_i32 = arith.constant 0 : i32
    %c0_i32_0 = arith.constant 0 : i32
    %c0_i32_1 = arith.constant 0 : i32
    return %c0_i32, %c0_i32_0 : i32, i32
  }
  func.func @transform_3(%arg0: i32, %arg1: i32) -> (i32, i32, i32) {
    %c0_i32 = arith.constant 0 : i32
    %c0_i32_0 = arith.constant 0 : i32
    return %arg0, %c0_i32, %arg1 : i32, i32, i32
  }
}

</mosaic_0001>

<llo_original>
// kernel: tpu_custom_call.1
$region0: #{tpu_custom_call.1}
  #allocation0 [shape = 'u32[]', space=smem, size = 0x4, offset = 0x4, fixed_abs, tag = 'smem constant byte address 0x4 - core index']
  #allocation1 [shape = 'u32[72,128]{1,0:T(1,128)}', space=vmem, size = 0x9000, scoped, tag = 'internal scratch']
  %s0 = inlined_call_operand.hbm [shape: f32[2,16,1024], index: 0, kind: input, shape index: {}]
  %s1 = inlined_call_operand.vmem [shape: f32[32,16], index: 1, kind: input, shape index: {}]
  %s2 = inlined_call_operand.vmem [shape: f32[32,1], index: 2, kind: input, shape index: {}]
  %s3 = inlined_call_operand.hbm [shape: f32[2,32,1024], index: 3, kind: output, shape index: {}]
  %s4 = sld [smem:[#allocation0]]
  $region49: #{tpu_custom_call.1} parent=0
    _
  %s6 = ssub.s32 1, %s4
  %s7 = scalar_select 0, %s6, %s4
  $region1: #{tpu_custom_call.1} parent=0
    #allocation2 [shape = 'u8[131072]{0}', space=vmem, size = 0x20000, scoped, tag = 'input window, operand 0']
    #allocation3 [shape = 's32[2]{0}', space=sflag, size = 0x8, scoped, tag = 'scoped memory for tpu_custom_call.1']
    #allocation4 [shape = 's32[2]{0}', space=sflag, size = 0x8, scoped, tag = 'scoped memory for tpu_custom_call.1']
    #allocation5 [shape = 'u8[262144]{0}', space=vmem, size = 0x40000, scoped, tag = 'output window, operand 0']
    %8 = vsyncpa [#allocation3], 0
    %s9 = scalar_lea.sflag [#allocation3], 1
    %10 = vsyncpa %s9, 0
    %11 = vsyncpa [#allocation4], 0
    %s12 = scalar_lea.sflag [#allocation4], 1
    %13 = vsyncpa %s12, 0
    loop: start=0, step=1, limit=4
    $region2: #{tpu_custom_call.1} parent=1 // loop_pre_header
      _
    $region3: #{tpu_custom_call.1} parent=1 // loop_header
      %s15 = sphi 0, %s19
      %p16 = scmp.ge.s32.totalorder %s15, 4
      %s22 = sphi 0, %s34
      %s23 = sphi 0, %s30
      %s24 = sphi 0, %s22
      %s25 = sphi 0, %s23
      %s26 = sphi 0, %s24
      %s27 = sphi 0, %s25
      %s39 = sphi 0, %s41
      %s42 = sphi 0, %s39
      %s43 = sphi 0, %s42
      %s59 = sphi 0, %s43
      %s63 = sphi 0, %s63
      %s65 = sphi 0, %s63
      %s66 = sphi 0, %s65
      %s80 = sphi 0, %s66
      %s84 = sphi 0, %s84
      %s86 = sphi 0, %s84
      %s87 = sphi 0, %s86
      %s101 = sphi 0, %s87
      %s109 = sphi 0, %s111
      %s112 = sphi 0, %s109
      %s113 = sphi 0, %s112
      %s129 = sphi 0, %s113
    $region4: #{tpu_custom_call.1} parent=1 // loop_header_branch
      %18 = sbr.rel (%p16) target = $region8
    $region5: #{tpu_custom_call.1} parent=1 // loop_body
      %s20 = ssub.s32 %s15, 1
      %s21 = ssub.s32 %s15, 2
      %s28 = sadd.s32 1, %s23
      %p29 = scmp.ge.s32.totalorder %s28, 1
      %s30 = scalar_select %p29, 0, %s28
      %s31 = sadd.s32 1, %s22
      %s32 = scalar_select %p29, %s31, %s22
      %p33 = scmp.ge.s32.totalorder %s32, 2
      %s34 = scalar_select %p33, 0, %s32
      %s35 = ssub.s32 %s22, %s34
      %s36 = ssub.s32 %s23, %s30
      %s37 = sor.u32 %s35, %s36
      %p38 = scmp.eq.s32.totalorder %s37, 0
      %s40 = sadd.s32 %s39, 1
      %s41 = scalar_select %p38, %s39, %s40
      %p44 = pneg %p38
      %p45 = scmp.eq.s32.totalorder %s15, 1
      %p46 = por %p44, %p45
      %p47 = scmp.ne.s32.totalorder %s39, %s42
      %p48 = scmp.eq.s32.totalorder %s15, 0
      %p49 = por %p47, %p48
      %p50 = scmp.ne.s32.totalorder %s39, %s42
      %p51 = scmp.eq.s32.totalorder %s20, 1
      %p52 = por %p50, %p51
      %p53 = scmp.ne.s32.totalorder %s42, %s43
      %p54 = scmp.eq.s32.totalorder %s20, 0
      %p55 = por %p53, %p54
      %p56 = scmp.ne.s32.totalorder %s42, %s43
      %p57 = scmp.eq.s32.totalorder %s21, 1
      %p58 = por %p56, %p57
      %p60 = scmp.ne.s32.totalorder %s43, %s59
      %p61 = scmp.eq.s32.totalorder %s21, 0
      %p62 = por %p60, %p61
      %s64 = sadd.s32 %s63, 1
      %p67 = scmp.eq.s32.totalorder %s15, 1
      %p68 = scmp.ne.s32.totalorder %s63, %s65
      %p69 = scmp.eq.s32.totalorder %s15, 0
      %p70 = por %p68, %p69
      %p71 = scmp.ne.s32.totalorder %s63, %s65
      %p72 = scmp.eq.s32.totalorder %s20, 1
      %p73 = por %p71, %p72
      %p74 = scmp.ne.s32.totalorder %s65, %s66
      %p75 = scmp.eq.s32.totalorder %s20, 0
      %p76 = por %p74, %p75
      %p77 = scmp.ne.s32.totalorder %s65, %s66
      %p78 = scmp.eq.s32.totalorder %s21, 1
      %p79 = por %p77, %p78
      %p81 = scmp.ne.s32.totalorder %s66, %s80
      %p82 = scmp.eq.s32.totalorder %s21, 0
      %p83 = por %p81, %p82
      %s85 = sadd.s32 %s84, 1
      %p88 = scmp.eq.s32.totalorder %s15, 1
      %p89 = scmp.ne.s32.totalorder %s84, %s86
      %p90 = scmp.eq.s32.totalorder %s15, 0
      %p91 = por %p89, %p90
      %p92 = scmp.ne.s32.totalorder %s84, %s86
      %p93 = scmp.eq.s32.totalorder %s20, 1
      %p94 = por %p92, %p93
      %p95 = scmp.ne.s32.totalorder %s86, %s87
      %p96 = scmp.eq.s32.totalorder %s20, 0
      %p97 = por %p95, %p96
      %p98 = scmp.ne.s32.totalorder %s86, %s87
      %p99 = scmp.eq.s32.totalorder %s21, 1
      %p100 = por %p98, %p99
      %p102 = scmp.ne.s32.totalorder %s87, %s101
      %p103 = scmp.eq.s32.totalorder %s21, 0
      %p104 = por %p102, %p103
      %s105 = ssub.s32 %s22, %s34
      %s106 = ssub.s32 %s23, %s30
      %s107 = sor.u32 %s105, %s106
      %p108 = scmp.eq.s32.totalorder %s107, 0
      %s110 = sadd.s32 %s109, 1
      %s111 = scalar_select %p108, %s109, %s110
      %p114 = pneg %p108
      %p115 = scmp.eq.s32.totalorder %s15, 1
      %p116 = por %p114, %p115
      %p117 = scmp.ne.s32.totalorder %s109, %s112
      %p118 = scmp.eq.s32.totalorder %s15, 0
      %p119 = por %p117, %p118
      %p120 = scmp.ne.s32.totalorder %s109, %s112
      %p121 = scmp.eq.s32.totalorder %s20, 1
      %p122 = por %p120, %p121
      %p123 = scmp.ne.s32.totalorder %s112, %s113
      %p124 = scmp.eq.s32.totalorder %s20, 0
      %p125 = por %p123, %p124
      %p126 = scmp.ne.s32.totalorder %s112, %s113
      %p127 = scmp.eq.s32.totalorder %s21, 1
      %p128 = por %p126, %p127
      %p130 = scmp.ne.s32.totalorder %s113, %s129
      %p131 = scmp.eq.s32.totalorder %s21, 0
      %p132 = por %p130, %p131
      %p133 = scmp.le.s32.totalorder 1, %s15
      %p134 = scmp.lt.s32.totalorder %s15, 3
      %p135 = pnand %p133, %p134
      %p136 = pneg %p135
      // Predicated region
      $region9: #{tpu_custom_call.1} parent=5 // pred_check
        _
      $region10: #{tpu_custom_call.1} parent=5 // pred_check_branch
        %138 = sbr.rel (%p135) target = $region12
      $region11: #{tpu_custom_call.1} parent=5 // pred_region
        %s139 = ssub.s32 %s15, 1
        // Predicated region
        $region13: #{tpu_custom_call.1} parent=11 // pred_check
          %p140 = pneg %p76
        $region14: #{tpu_custom_call.1} parent=11 // pred_check_branch
          %142 = sbr.rel (%p140) target = $region16
        $region15: #{tpu_custom_call.1} parent=11 // pred_region
          _
        $region16: #{tpu_custom_call.1} parent=11 // pred_fallthru
          _
        // Predicated region
        $region17: #{tpu_custom_call.1} parent=11 // pred_check
          %p143 = pneg %p97
        $region18: #{tpu_custom_call.1} parent=11 // pred_check_branch
          %145 = sbr.rel (%p143) target = $region20
        $region19: #{tpu_custom_call.1} parent=11 // pred_region
          _
        $region20: #{tpu_custom_call.1} parent=11 // pred_fallthru
          _
      $region12: #{tpu_custom_call.1} parent=5 // pred_fallthru
        _
      %p146 = scmp.lt.s32.totalorder %s15, 2
      // Predicated region
      $region21: #{tpu_custom_call.1} parent=5 // pred_check
        %p147 = pneg %p146
      $region22: #{tpu_custom_call.1} parent=5 // pred_check_branch
        %149 = sbr.rel (%p147) target = $region24
      $region23: #{tpu_custom_call.1} parent=5 // pred_region
        // Predicated region
        $region25: #{tpu_custom_call.1} parent=23 // pred_check
          %p150 = pneg %p49
        $region26: #{tpu_custom_call.1} parent=23 // pred_check_branch
          %152 = sbr.rel (%p150) target = $region28
        $region27: #{tpu_custom_call.1} parent=23 // pred_region
          %s153 = sand.u32 %s39, 1
          %s154 = scalar_lea.sflag [#allocation3], %s153
          %s155 = sand.u32 %s39, 1
          %s156 = smul.addr %s155, 128
          %s157 = scalar_lea.vmem [#allocation2], %s156
          %s158 = smul.u32 8, %s23
          %160 = vsyncadd %s154, 0
          %s161 = smul.addr %s22, 16
          %s162 = sadd.s32 %s158, %s161
          %s163 = smul.addr %s162, 8
          %s164 = scalar_lea.hbm %s0, %s163
          %s165 = sshll.u32 %s164, 4
          %s166 = int_to_ptr.hbm [resolvable:$true] %s165
          %s167 = sshll.u32 %s157, 4
          %s168 = int_to_ptr.vmem [resolvable:$true] %s167
          %173 = dma.hbm_to_vmem [thread:$0]  %s166, 2048, %s168, %s154, 1024, 1024, 64
        $region28: #{tpu_custom_call.1} parent=23 // pred_fallthru
          _
      $region24: #{tpu_custom_call.1} parent=5 // pred_fallthru
        _
      %p174 = scmp.le.s32.totalorder 1, %s15
      %p175 = scmp.lt.s32.totalorder %s15, 3
      %p176 = pnand %p174, %p175
      %p177 = pneg %p176
      // Predicated region
      $region29: #{tpu_custom_call.1} parent=5 // pred_check
        _
      $region30: #{tpu_custom_call.1} parent=5 // pred_check_branch
        %179 = sbr.rel (%p176) target = $region32
      $region31: #{tpu_custom_call.1} parent=5 // pred_region
        %s180 = ssub.s32 %s15, 1
        %s181 = sand.u32 %s42, 1
        %s182 = scalar_lea.sflag [#allocation3], %s181
        %s183 = sand.u32 %s42, 1
        %s184 = smul.addr %s183, 128
        %s185 = scalar_lea.vmem [#allocation2], %s184
        // Predicated region
        $region33: #{tpu_custom_call.1} parent=31 // pred_check
          %p186 = pneg %p55
        $region34: #{tpu_custom_call.1} parent=31 // pred_check_branch
          %188 = sbr.rel (%p186) target = $region36
        $region35: #{tpu_custom_call.1} parent=31 // pred_region
          %190 = dma.done %s182, 2048
        $region36: #{tpu_custom_call.1} parent=31 // pred_fallthru
          _
        %s191 = sand.u32 %s42, 1
        %s192 = scalar_lea.sflag [#allocation3], %s191
        %s193 = sand.u32 %s42, 1
        %s194 = smul.addr %s193, 128
        %s195 = scalar_lea.vmem [#allocation2], %s194
        %p196 = pneg %p55
        %p197 = pneg %p52
        %p198 = pneg %p76
        %p199 = pneg %p73
        %p200 = pneg %p97
        %p201 = pneg %p94
        %p202 = pneg %p125
        %p203 = pneg %p122
        %s204 = sand.u32 %s112, 1
        %s205 = scalar_lea.sflag [#allocation4], %s204
        %s206 = sand.u32 %s112, 1
        %s207 = smul.addr %s206, 256
        %s208 = scalar_lea.vmem [#allocation5], %s207
        %s209 = smul.u32 8, %s25
        %s210 = smul.u32 8, %s25
        %v211 = vld [vmem:[%s1] sm:$0xff]
        %v212 = vld [vmem:[%s1 + $0x8] sm:$0xff]
        %v213 = vld [vmem:[%s1 + $0x10] sm:$0xff]
        %v214 = vld [vmem:[%s1 + $0x18] sm:$0xff]
        %v215 = vld [vmem:[%s185] sm:$0xff]
        %v216 = vld [vmem:[%s185 + $0x8] sm:$0xff]
        %v217 = vld [vmem:[%s185 + $0x10] sm:$0xff]
        %v218 = vld [vmem:[%s185 + $0x18] sm:$0xff]
        %v219 = vld [vmem:[%s185 + $0x20] sm:$0xff]
        %v220 = vld [vmem:[%s185 + $0x28] sm:$0xff]
        %v221 = vld [vmem:[%s185 + $0x30] sm:$0xff]
        %v222 = vld [vmem:[%s185 + $0x38] sm:$0xff]
        %v223 = vld [vmem:[%s185 + $0x40] sm:$0xff]
        %v224 = vld [vmem:[%s185 + $0x48] sm:$0xff]
        %v225 = vld [vmem:[%s185 + $0x50] sm:$0xff]
        %v226 = vld [vmem:[%s185 + $0x58] sm:$0xff]
        %v227 = vld [vmem:[%s185 + $0x60] sm:$0xff]
        %v228 = vld [vmem:[%s185 + $0x68] sm:$0xff]
        %v229 = vld [vmem:[%s185 + $0x70] sm:$0xff]
        %v230 = vld [vmem:[%s185 + $0x78] sm:$0xff]
        %v231 = vld [vmem:[%s2] sm:$0xff]
        %v232 = vld [vmem:[%s2 + $0x8] sm:$0xff]
        %v233 = vld [vmem:[%s2 + $0x10] sm:$0xff]
        %v234 = vld [vmem:[%s2 + $0x18] sm:$0xff]
        %236 = vset.pattern.permute.xlu0 0
        %237 = vperm.xlu0 %236, %v231
        %v238 = vpop.permute.xlu0 %237
        %241 = vset.pattern.permute.xlu0 0
        %242 = vperm.xlu0 %241, %v232
        %v243 = vpop.permute.xlu0 %242
        %246 = vset.pattern.permute.xlu0 0
        %247 = vperm.xlu0 %246, %v233
        %v248 = vpop.permute.xlu0 %247
        %251 = vset.pattern.permute.xlu0 0
        %252 = vperm.xlu0 %251, %v234
        %v253 = vpop.permute.xlu0 %252
        %vm255 = vcmask 130048
        %v257 = vsel %vm255, %v211, 0
        %v260 = vsel %vm255, %v212, 0
        %v263 = vsel %vm255, %v213, 0
        %v266 = vsel %vm255, %v214, 0
        %268 = vmatpush.msra.mxu0 0.0
        %269 = vmatpush.msra.mxu0 0.0
        %270 = vmatpush.msra.mxu0 0.0
        %271 = vmatpush.msra.mxu0 0.0
        %272 = vmatpush.msra.mxu0 0.0
        %273 = vmatpush.msra.mxu0 0.0
        %274 = vmatpush.msra.mxu0 0.0
        %275 = vmatpush.msra.mxu0 0.0
        %276 = vmatpush.msra.mxu0 0.0
        %277 = vmatpush.msra.mxu0 0.0
        %278 = vmatpush.msra.mxu0 0.0
        %279 = vmatpush.msra.mxu0 0.0
        %280 = vmatpush.msra.mxu0 0.0
        %281 = vmatpush.msra.mxu0 0.0
        %282 = vmatpush.msra.mxu0 %v223
        %283 = vmatpush.msra.mxu0 %v215
        %284 = vmatmul.f32.gmra.mxu0 %v257
        %v285 = vpop.f32.mrf.mxu0
        %v286 = vadd.f32 %v238, %v285
        %287 = vmatmul.f32.gmra.mxu0 %v260
        %v288 = vpop.f32.mrf.mxu0
        %v289 = vadd.f32 %v243, %v288
        %290 = vmatmul.f32.gmra.mxu0 %v263
        %v291 = vpop.f32.mrf.mxu0
        %v292 = vadd.f32 %v248, %v291
        %293 = vmatmul.f32.gmra.mxu0 %v266
        %v294 = vpop.f32.mrf.mxu0
        %v295 = vadd.f32 %v253, %v294
        %296 = vdwg.mxu0
        %297 = vmatpush.msra.mxu0 0.0
        %298 = vmatpush.msra.mxu0 0.0
        %299 = vmatpush.msra.mxu0 0.0
        %300 = vmatpush.msra.mxu0 0.0
        %301 = vmatpush.msra.mxu0 0.0
        %302 = vmatpush.msra.mxu0 0.0
        %303 = vmatpush.msra.mxu0 0.0
        %304 = vmatpush.msra.mxu0 0.0
        %305 = vmatpush.msra.mxu0 0.0
        %306 = vmatpush.msra.mxu0 0.0
        %307 = vmatpush.msra.mxu0 0.0
        %308 = vmatpush.msra.mxu0 0.0
        %309 = vmatpush.msra.mxu0 0.0
        %310 = vmatpush.msra.mxu0 0.0
        %311 = vmatpush.msra.mxu0 %v224
        %312 = vmatpush.msra.mxu0 %v216
        %313 = vmatmul.f32.gmra.mxu0 %v257
        %v314 = vpop.f32.mrf.mxu0
        %v315 = vadd.f32 %v238, %v314
        %316 = vmatmul.f32.gmra.mxu0 %v260
        %v317 = vpop.f32.mrf.mxu0
        %v318 = vadd.f32 %v243, %v317
        %319 = vmatmul.f32.gmra.mxu0 %v263
        %v320 = vpop.f32.mrf.mxu0
        %v321 = vadd.f32 %v248, %v320
        %322 = vmatmul.f32.gmra.mxu0 %v266
        %v323 = vpop.f32.mrf.mxu0
        %v324 = vadd.f32 %v253, %v323
        %325 = vdwg.mxu0
        %326 = vmatpush.msra.mxu0 0.0
        %327 = vmatpush.msra.mxu0 0.0
        %328 = vmatpush.msra.mxu0 0.0
        %329 = vmatpush.msra.mxu0 0.0
        %330 = vmatpush.msra.mxu0 0.0
        %331 = vmatpush.msra.mxu0 0.0
        %332 = vmatpush.msra.mxu0 0.0
        %333 = vmatpush.msra.mxu0 0.0
        %334 = vmatpush.msra.mxu0 0.0
        %335 = vmatpush.msra.mxu0 0.0
        %336 = vmatpush.msra.mxu0 0.0
        %337 = vmatpush.msra.mxu0 0.0
        %338 = vmatpush.msra.mxu0 0.0
        %339 = vmatpush.msra.mxu0 0.0
        %340 = vmatpush.msra.mxu0 %v225
        %341 = vmatpush.msra.mxu0 %v217
        %342 = vmatmul.f32.gmra.mxu0 %v257
        %v343 = vpop.f32.mrf.mxu0
        %v344 = vadd.f32 %v238, %v343
        %345 = vmatmul.f32.gmra.mxu0 %v260
        %v346 = vpop.f32.mrf.mxu0
        %v347 = vadd.f32 %v243, %v346
        %348 = vmatmul.f32.gmra.mxu0 %v263
        %v349 = vpop.f32.mrf.mxu0
        %v350 = vadd.f32 %v248, %v349
        %351 = vmatmul.f32.gmra.mxu0 %v266
        %v352 = vpop.f32.mrf.mxu0
        %v353 = vadd.f32 %v253, %v352
        %354 = vdwg.mxu0
        %355 = vmatpush.msra.mxu0 0.0
        %356 = vmatpush.msra.mxu0 0.0
        %357 = vmatpush.msra.mxu0 0.0
        %358 = vmatpush.msra.mxu0 0.0
        %359 = vmatpush.msra.mxu0 0.0
        %360 = vmatpush.msra.mxu0 0.0
        %361 = vmatpush.msra.mxu0 0.0
        %362 = vmatpush.msra.mxu0 0.0
        %363 = vmatpush.msra.mxu0 0.0
        %364 = vmatpush.msra.mxu0 0.0
        %365 = vmatpush.msra.mxu0 0.0
        %366 = vmatpush.msra.mxu0 0.0
        %367 = vmatpush.msra.mxu0 0.0
        %368 = vmatpush.msra.mxu0 0.0
        %369 = vmatpush.msra.mxu0 %v226
        %370 = vmatpush.msra.mxu0 %v218
        %371 = vmatmul.f32.gmra.mxu0 %v257
        %v372 = vpop.f32.mrf.mxu0
        %v373 = vadd.f32 %v238, %v372
        %374 = vmatmul.f32.gmra.mxu0 %v260
        %v375 = vpop.f32.mrf.mxu0
        %v376 = vadd.f32 %v243, %v375
        %377 = vmatmul.f32.gmra.mxu0 %v263
        %v378 = vpop.f32.mrf.mxu0
        %v379 = vadd.f32 %v248, %v378
        %380 = vmatmul.f32.gmra.mxu0 %v266
        %v381 = vpop.f32.mrf.mxu0
        %v382 = vadd.f32 %v253, %v381
        %383 = vdwg.mxu0
        %384 = vmatpush.msra.mxu0 0.0
        %385 = vmatpush.msra.mxu0 0.0
        %386 = vmatpush.msra.mxu0 0.0
        %387 = vmatpush.msra.mxu0 0.0
        %388 = vmatpush.msra.mxu0 0.0
        %389 = vmatpush.msra.mxu0 0.0
        %390 = vmatpush.msra.mxu0 0.0
        %391 = vmatpush.msra.mxu0 0.0
        %392 = vmatpush.msra.mxu0 0.0
        %393 = vmatpush.msra.mxu0 0.0
        %394 = vmatpush.msra.mxu0 0.0
        %395 = vmatpush.msra.mxu0 0.0
        %396 = vmatpush.msra.mxu0 0.0
        %397 = vmatpush.msra.mxu0 0.0
        %398 = vmatpush.msra.mxu0 %v227
        %399 = vmatpush.msra.mxu0 %v219
        %400 = vmatmul.f32.gmra.mxu0 %v257
        %v401 = vpop.f32.mrf.mxu0
        %v402 = vadd.f32 %v238, %v401
        %403 = vmatmul.f32.gmra.mxu0 %v260
        %v404 = vpop.f32.mrf.mxu0
        %v405 = vadd.f32 %v243, %v404
        %406 = vmatmul.f32.gmra.mxu0 %v263
        %v407 = vpop.f32.mrf.mxu0
        %v408 = vadd.f32 %v248, %v407
        %409 = vmatmul.f32.gmra.mxu0 %v266
        %v410 = vpop.f32.mrf.mxu0
        %v411 = vadd.f32 %v253, %v410
        %412 = vdwg.mxu0
        %413 = vmatpush.msra.mxu0 0.0
        %414 = vmatpush.msra.mxu0 0.0
        %415 = vmatpush.msra.mxu0 0.0
        %416 = vmatpush.msra.mxu0 0.0
        %417 = vmatpush.msra.mxu0 0.0
        %418 = vmatpush.msra.mxu0 0.0
        %419 = vmatpush.msra.mxu0 0.0
        %420 = vmatpush.msra.mxu0 0.0
        %421 = vmatpush.msra.mxu0 0.0
        %422 = vmatpush.msra.mxu0 0.0
        %423 = vmatpush.msra.mxu0 0.0
        %424 = vmatpush.msra.mxu0 0.0
        %425 = vmatpush.msra.mxu0 0.0
        %426 = vmatpush.msra.mxu0 0.0
        %427 = vmatpush.msra.mxu0 %v228
        %428 = vmatpush.msra.mxu0 %v220
        %429 = vmatmul.f32.gmra.mxu0 %v257
        %v430 = vpop.f32.mrf.mxu0
        %v431 = vadd.f32 %v238, %v430
        %432 = vmatmul.f32.gmra.mxu0 %v260
        %v433 = vpop.f32.mrf.mxu0
        %v434 = vadd.f32 %v243, %v433
        %435 = vmatmul.f32.gmra.mxu0 %v263
        %v436 = vpop.f32.mrf.mxu0
        %v437 = vadd.f32 %v248, %v436
        %438 = vmatmul.f32.gmra.mxu0 %v266
        %v439 = vpop.f32.mrf.mxu0
        %v440 = vadd.f32 %v253, %v439
        %441 = vdwg.mxu0
        %442 = vmatpush.msra.mxu0 0.0
        %443 = vmatpush.msra.mxu0 0.0
        %444 = vmatpush.msra.mxu0 0.0
        %445 = vmatpush.msra.mxu0 0.0
        %446 = vmatpush.msra.mxu0 0.0
        %447 = vmatpush.msra.mxu0 0.0
        %448 = vmatpush.msra.mxu0 0.0
        %449 = vmatpush.msra.mxu0 0.0
        %450 = vmatpush.msra.mxu0 0.0
        %451 = vmatpush.msra.mxu0 0.0
        %452 = vmatpush.msra.mxu0 0.0
        %453 = vmatpush.msra.mxu0 0.0
        %454 = vmatpush.msra.mxu0 0.0
        %455 = vmatpush.msra.mxu0 0.0
        %456 = vmatpush.msra.mxu0 %v229
        %457 = vmatpush.msra.mxu0 %v221
        %458 = vmatmul.f32.gmra.mxu0 %v257
        %v459 = vpop.f32.mrf.mxu0
        %v460 = vadd.f32 %v238, %v459
        %461 = vmatmul.f32.gmra.mxu0 %v260
        %v462 = vpop.f32.mrf.mxu0
        %v463 = vadd.f32 %v243, %v462
        %464 = vmatmul.f32.gmra.mxu0 %v263
        %v465 = vpop.f32.mrf.mxu0
        %v466 = vadd.f32 %v248, %v465
        %467 = vmatmul.f32.gmra.mxu0 %v266
        %v468 = vpop.f32.mrf.mxu0
        %v469 = vadd.f32 %v253, %v468
        %470 = vdwg.mxu0
        %471 = vmatpush.msra.mxu0 0.0
        %472 = vmatpush.msra.mxu0 0.0
        %473 = vmatpush.msra.mxu0 0.0
        %474 = vmatpush.msra.mxu0 0.0
        %475 = vmatpush.msra.mxu0 0.0
        %476 = vmatpush.msra.mxu0 0.0
        %477 = vmatpush.msra.mxu0 0.0
        %478 = vmatpush.msra.mxu0 0.0
        %479 = vmatpush.msra.mxu0 0.0
        %480 = vmatpush.msra.mxu0 0.0
        %481 = vmatpush.msra.mxu0 0.0
        %482 = vmatpush.msra.mxu0 0.0
        %483 = vmatpush.msra.mxu0 0.0
        %484 = vmatpush.msra.mxu0 0.0
        %485 = vmatpush.msra.mxu0 %v230
        %486 = vmatpush.msra.mxu0 %v222
        %487 = vmatmul.f32.gmra.mxu0 %v257
        %v488 = vpop.f32.mrf.mxu0
        %v489 = vadd.f32 %v238, %v488
        %490 = vmatmul.f32.gmra.mxu0 %v260
        %v491 = vpop.f32.mrf.mxu0
        %v492 = vadd.f32 %v243, %v491
        %493 = vmatmul.f32.gmra.mxu0 %v263
        %v494 = vpop.f32.mrf.mxu0
        %v495 = vadd.f32 %v248, %v494
        %496 = vmatmul.f32.gmra.mxu0 %v266
        %v497 = vpop.f32.mrf.mxu0
        %v498 = vadd.f32 %v253, %v497
        %499 = vdwg.mxu0
        %v500 = vmax.f32 %v286, 0.0
        %v501 = vmax.f32 %v315, 0.0
        %v502 = vmax.f32 %v344, 0.0
        %v503 = vmax.f32 %v373, 0.0
        %v504 = vmax.f32 %v402, 0.0
        %v505 = vmax.f32 %v431, 0.0
        %v506 = vmax.f32 %v460, 0.0
        %v507 = vmax.f32 %v489, 0.0
        %v508 = vmax.f32 %v289, 0.0
        %v509 = vmax.f32 %v318, 0.0
        %v510 = vmax.f32 %v347, 0.0
        %v511 = vmax.f32 %v376, 0.0
        %v512 = vmax.f32 %v405, 0.0
        %v513 = vmax.f32 %v434, 0.0
        %v514 = vmax.f32 %v463, 0.0
        %v515 = vmax.f32 %v492, 0.0
        %v516 = vmax.f32 %v292, 0.0
        %v517 = vmax.f32 %v321, 0.0
        %v518 = vmax.f32 %v350, 0.0
        %v519 = vmax.f32 %v379, 0.0
        %v520 = vmax.f32 %v408, 0.0
        %v521 = vmax.f32 %v437, 0.0
        %v522 = vmax.f32 %v466, 0.0
        %v523 = vmax.f32 %v495, 0.0
        %v524 = vmax.f32 %v295, 0.0
        %v525 = vmax.f32 %v324, 0.0
        %v526 = vmax.f32 %v353, 0.0
        %v527 = vmax.f32 %v382, 0.0
        %v528 = vmax.f32 %v411, 0.0
        %v529 = vmax.f32 %v440, 0.0
        %v530 = vmax.f32 %v469, 0.0
        %v531 = vmax.f32 %v498, 0.0
        %532 = vst [vmem:[%s208] sm:$0xff] %v500
        %533 = vst [vmem:[%s208 + $0x8] sm:$0xff] %v501
        %534 = vst [vmem:[%s208 + $0x10] sm:$0xff] %v502
        %535 = vst [vmem:[%s208 + $0x18] sm:$0xff] %v503
        %536 = vst [vmem:[%s208 + $0x20] sm:$0xff] %v504
        %537 = vst [vmem:[%s208 + $0x28] sm:$0xff] %v505
        %538 = vst [vmem:[%s208 + $0x30] sm:$0xff] %v506
        %539 = vst [vmem:[%s208 + $0x38] sm:$0xff] %v507
        %540 = vst [vmem:[%s208 + $0x40] sm:$0xff] %v508
        %541 = vst [vmem:[%s208 + $0x48] sm:$0xff] %v509
        %542 = vst [vmem:[%s208 + $0x50] sm:$0xff] %v510
        %543 = vst [vmem:[%s208 + $0x58] sm:$0xff] %v511
        %544 = vst [vmem:[%s208 + $0x60] sm:$0xff] %v512
        %545 = vst [vmem:[%s208 + $0x68] sm:$0xff] %v513
        %546 = vst [vmem:[%s208 + $0x70] sm:$0xff] %v514
        %547 = vst [vmem:[%s208 + $0x78] sm:$0xff] %v515
        %548 = vst [vmem:[%s208 + $0x80] sm:$0xff] %v516
        %549 = vst [vmem:[%s208 + $0x88] sm:$0xff] %v517
        %550 = vst [vmem:[%s208 + $0x90] sm:$0xff] %v518
        %551 = vst [vmem:[%s208 + $0x98] sm:$0xff] %v519
        %552 = vst [vmem:[%s208 + $0xa0] sm:$0xff] %v520
        %553 = vst [vmem:[%s208 + $0xa8] sm:$0xff] %v521
        %554 = vst [vmem:[%s208 + $0xb0] sm:$0xff] %v522
        %555 = vst [vmem:[%s208 + $0xb8] sm:$0xff] %v523
        %556 = vst [vmem:[%s208 + $0xc0] sm:$0xff] %v524
        %557 = vst [vmem:[%s208 + $0xc8] sm:$0xff] %v525
        %558 = vst [vmem:[%s208 + $0xd0] sm:$0xff] %v526
        %559 = vst [vmem:[%s208 + $0xd8] sm:$0xff] %v527
        %560 = vst [vmem:[%s208 + $0xe0] sm:$0xff] %v528
        %561 = vst [vmem:[%s208 + $0xe8] sm:$0xff] %v529
        %562 = vst [vmem:[%s208 + $0xf0] sm:$0xff] %v530
        %563 = vst [vmem:[%s208 + $0xf8] sm:$0xff] %v531
        %s564 = sand.u32 %s112, 1
        %s565 = scalar_lea.sflag [#allocation4], %s564
        %s566 = sand.u32 %s112, 1
        %s567 = smul.addr %s566, 256
        %s568 = scalar_lea.vmem [#allocation5], %s567
        // Predicated region
        $region37: #{tpu_custom_call.1} parent=31 // pred_check
          %p569 = pneg %p122
        $region38: #{tpu_custom_call.1} parent=31 // pred_check_branch
          %571 = sbr.rel (%p569) target = $region40
        $region39: #{tpu_custom_call.1} parent=31 // pred_region
          %s572 = smul.u32 8, %s25
          %574 = vsyncadd %s565, 0
          %s575 = smul.addr %s24, 32
          %s576 = sadd.s32 %s572, %s575
          %s577 = smul.addr %s576, 8
          %s578 = scalar_lea.hbm %s3, %s577
          %s579 = sshll.u32 %s568, 4
          %s580 = int_to_ptr.vmem [resolvable:$true] %s579
          %s581 = sshll.u32 %s578, 4
          %s582 = int_to_ptr.hbm [resolvable:$true] %s581
          %587 = dma.vmem_to_hbm [thread:$0]  %s580, 4096, %s582, %s565, 1024, 1024, 64
        $region40: #{tpu_custom_call.1} parent=31 // pred_fallthru
          _
      $region32: #{tpu_custom_call.1} parent=5 // pred_fallthru
        _
      %p588 = scmp.le.s32.totalorder 2, %s15
      // Predicated region
      $region41: #{tpu_custom_call.1} parent=5 // pred_check
        %p589 = pneg %p588
      $region42: #{tpu_custom_call.1} parent=5 // pred_check_branch
        %591 = sbr.rel (%p589) target = $region44
      $region43: #{tpu_custom_call.1} parent=5 // pred_region
        %s592 = ssub.s32 %s15, 2
        // Predicated region
        $region45: #{tpu_custom_call.1} parent=43 // pred_check
          %p593 = pneg %p128
        $region46: #{tpu_custom_call.1} parent=43 // pred_check_branch
          %595 = sbr.rel (%p593) target = $region48
        $region47: #{tpu_custom_call.1} parent=43 // pred_region
          %s596 = sand.u32 %s113, 1
          %s597 = scalar_lea.sflag [#allocation4], %s596
          %s598 = sand.u32 %s113, 1
          %s599 = smul.addr %s598, 256
          %s600 = scalar_lea.vmem [#allocation5], %s599
          %602 = dma.done %s597, 4096
        $region48: #{tpu_custom_call.1} parent=43 // pred_fallthru
          _
      $region44: #{tpu_custom_call.1} parent=5 // pred_fallthru
        _
    $region6: #{tpu_custom_call.1} parent=1 // loop_footer
      %s19 = sadd.s32 1, %s15
    $region7: #{tpu_custom_call.1} parent=1 // loop_footer_branch
      %14 = sbr.rel target = $region3
    $region8: #{tpu_custom_call.1} parent=1 // loop_exit
      _
    %603 = vsyncpa [#allocation3], 1
    %s604 = scalar_lea.sflag [#allocation3], 1
    %605 = vsyncpa %s604, 1
    %606 = vsyncpa [#allocation4], 1
    %s607 = scalar_lea.sflag [#allocation4], 1
    %608 = vsyncpa %s607, 1

</llo_original>
